<compile_context>
chip_gen: v5e
topology: v5e:2x2
jax: 0.10.0
libtpu: 0.0.40
codegen_flags: <defaults>
</compile_context>

<pallas_src>
import functools
import math

import jax
import jax.numpy as jnp
from jax.experimental import pallas as pl
from jax.experimental.pallas import tpu as pltpu

BN_EPS = 1e-5
_INV_SQRT2 = 1.0 / math.sqrt(2.0)


def _round_up(v, m):
    return (v + m - 1) // m * m


def _gelu_exact(h):
    # PyTorch default nn.GELU() (erf-based).
    return 0.5 * h * (1.0 + jax.lax.erf(h * _INV_SQRT2))


def _pass1_kernel(x_ref, wT_ref, b_ref, sum_ref, sq_ref, acc_s, acc_q,
                  *, tile_m, m_valid, need_mask):
    """Per-tile Linear+GELU, accumulate per-channel sum / sum-of-squares."""
    t = pl.program_id(0)

    @pl.when(t == 0)
    def _():
        acc_s[...] = jnp.zeros_like(acc_s)
        acc_q[...] = jnp.zeros_like(acc_q)

    h = jnp.dot(x_ref[...], wT_ref[...],
                preferred_element_type=jnp.float32) + b_ref[...]
    g = _gelu_exact(h)

    if need_mask:
        # Zero out rows past the true M so padded rows don't pollute BN stats.
        row = t * tile_m + jax.lax.broadcasted_iota(jnp.int32, (tile_m, 1), 0)
        g = jnp.where(row < m_valid, g, 0.0)

    acc_s[...] += jnp.sum(g, axis=0, keepdims=True)
    acc_q[...] += jnp.sum(g * g, axis=0, keepdims=True)

    @pl.when(t == pl.num_programs(0) - 1)
    def _():
        sum_ref[...] = acc_s[...]
        sq_ref[...] = acc_q[...]


def _pass2_kernel(x_ref, wT_ref, b_ref, scale_ref, shift_ref, o_ref):
    """Recompute Linear+GELU per tile, apply folded BN as a single FMA."""
    h = jnp.dot(x_ref[...], wT_ref[...],
                preferred_element_type=jnp.float32) + b_ref[...]
    g = _gelu_exact(h)
    o_ref[...] = (g * scale_ref[...] + shift_ref[...]).astype(o_ref.dtype)


def state_to_features(x, wT, b, gamma, beta, *, tile_m=1024):
    """x: (L, B, d) float32 -> (L, B, n_d) float32."""
    L, B, d = x.shape
    d_in, n_d = wT.shape
    assert d_in == d
    M = L * B

    # Lane-dense padding (last dims multiples of 128) and M-tile padding.
    d_pad = _round_up(d, 128)
    n_pad = _round_up(n_d, 128)
    tile_m = min(tile_m, _round_up(M, 8))
    M_pad = _round_up(M, tile_m)
    num_tiles = M_pad // tile_m
    need_mask = M_pad != M

    x2 = jnp.pad(x.reshape(M, d), ((0, M_pad - M), (0, d_pad - d)))
    wTp = jnp.pad(wT, ((0, d_pad - d), (0, n_pad - n_d)))
    bp = jnp.pad(b.reshape(1, n_d), ((0, 0), (0, n_pad - n_d)))
    gp = jnp.pad(gamma.reshape(1, n_d), ((0, 0), (0, n_pad - n_d)),
                 constant_values=1.0)
    btp = jnp.pad(beta.reshape(1, n_d), ((0, 0), (0, n_pad - n_d)))

    # Explicit VMEM budget: double-buffered x + out tiles, resident wT,
    # small (1, n_pad) vectors / scratch, with headroom.  Clamp to [16, 32] MiB
    # so it fits v7x's smaller physical VMEM while raising the v5e default.
    blk_bytes = 4 * (2 * tile_m * d_pad + 2 * tile_m * n_pad
                     + 2 * d_pad * n_pad + 16 * n_pad)
    vmem_limit = int(min(max(3 * blk_bytes, 16 << 20), 32 << 20))

    x_spec = pl.BlockSpec((tile_m, d_pad), lambda t: (t, 0))
    w_spec = pl.BlockSpec((d_pad, n_pad), lambda t: (0, 0))
    vec_spec = pl.BlockSpec((1, n_pad), lambda t: (0, 0))

    # ---- Pass 1: accumulate per-channel sum / sum-of-squares of GELU output.
    sums, sqs = pl.pallas_call(
        functools.partial(_pass1_kernel, tile_m=tile_m, m_valid=M,
                          need_mask=need_mask),
        out_shape=(jax.ShapeDtypeStruct((1, n_pad), jnp.float32),
                   jax.ShapeDtypeStruct((1, n_pad), jnp.float32)),
        grid_spec=pltpu.PrefetchScalarGridSpec(
            num_scalar_prefetch=0,
            grid=(num_tiles,),
            in_specs=[x_spec, w_spec, vec_spec],
            out_specs=[vec_spec, vec_spec],
            scratch_shapes=[pltpu.VMEM((1, n_pad), jnp.float32),
                            pltpu.VMEM((1, n_pad), jnp.float32)]),
        compiler_params=pltpu.CompilerParams(
            dimension_semantics=("arbitrary",),
            vmem_limit_bytes=vmem_limit),
    )(x2, wTp, bp)

    # ---- Tiny glue: biased batch stats, fold BN affine into scale/shift.
    mean = sums * (1.0 / M)
    var = jnp.maximum(sqs * (1.0 / M) - mean * mean, 0.0)
    scale = gp * jax.lax.rsqrt(var + BN_EPS)
    shift = btp - mean * scale

    # ---- Pass 2: recompute Linear+GELU, apply scale/shift (parallel grid).
    out2 = pl.pallas_call(
        _pass2_kernel,
        out_shape=jax.ShapeDtypeStruct((M_pad, n_pad), x.dtype),
        grid_spec=pltpu.PrefetchScalarGridSpec(
            num_scalar_prefetch=0,
            grid=(num_tiles,),
            in_specs=[x_spec, w_spec, vec_spec, vec_spec, vec_spec],
            out_specs=pl.BlockSpec((tile_m, n_pad), lambda t: (t, 0))),
        compiler_params=pltpu.CompilerParams(
            dimension_semantics=("parallel",),
            vmem_limit_bytes=vmem_limit),
    )(x2, wTp, bp, scale, shift)

    return out2[:M, :n_d].reshape(L, B, n_d)


def _reference(x, wT, b, gamma, beta):
    h = jnp.einsum("lbd,dn->lbn", x, wT) + b[0]
    g = _gelu_exact(h)
    mean = jnp.mean(g, axis=(0, 1), keepdims=True)
    var = jnp.mean((g - mean) ** 2, axis=(0, 1), keepdims=True)
    return (g - mean) * jax.lax.rsqrt(var + BN_EPS) * gamma[0] + beta[0]


if __name__ == "__main__":
    # Small shapes: seq L=8, batch B=2, d=16, n_d=32.
    L, B, d, n_d = 8, 2, 16, 32

    key = jax.random.PRNGKey(0)
    kx, kw, kb, kg, kbt = jax.random.split(key, 5)

    x = jax.random.normal(kx, (L, B, d), dtype=jnp.float32)

    # Deterministic synthetic parameters (not a checkpoint).
    bound = 1.0 / math.sqrt(d)
    W = jax.random.uniform(kw, (n_d, d), jnp.float32, -bound, bound)
    wT = W.T
    b = jax.random.uniform(kb, (1, n_d), jnp.float32, -bound, bound)
    gamma = 1.0 + 0.1 * jax.random.normal(kg, (1, n_d), dtype=jnp.float32)
    beta = 0.1 * jax.random.normal(kbt, (1, n_d), dtype=jnp.float32)

    out = state_to_features(x, wT, b, gamma, beta)
    out = jax.block_until_ready(out)

    ref = _reference(x, wT, b, gamma, beta)
    assert out.shape == (L, B, n_d)
    assert jnp.allclose(out, ref, atol=1e-4, rtol=1e-4), "mismatch vs reference"

    print("KERNEL_OK")
</pallas_src>

<mosaic_0001>
module attributes {stable_mosaic.version = 11 : i64} {
  func.func @_pass1_kernel(%arg0: i32, %arg1: memref<16x128xf32, #tpu.memory_space<vmem>>, %arg2: memref<128x128xf32, #tpu.memory_space<vmem>>, %arg3: memref<1x128xf32, #tpu.memory_space<vmem>>, %arg4: memref<1x128xf32, #tpu.memory_space<vmem>>, %arg5: memref<1x128xf32, #tpu.memory_space<vmem>>, %arg6: memref<1x128xf32, #tpu.memory_space<vmem>>, %arg7: memref<1x128xf32, #tpu.memory_space<vmem>>) attributes {dimension_semantics = [#tpu.dimension_semantics<arbitrary>], iteration_bounds = array<i64: 1>, scalar_prefetch = 0 : i64, scratch_operands = 2 : i64, tpu.core_type = #tpu.core_type<tc>, window_params = [{transform_indices = @transform_0, window_bounds = array<i64: 16, 128>}, {pipeline_mode = #tpu.pipeline_mode<synchronous>, transform_indices = @transform_1, window_bounds = array<i64: 128, 128>}, {pipeline_mode = #tpu.pipeline_mode<synchronous>, transform_indices = @transform_2, window_bounds = array<i64: 1, 128>}, {pipeline_mode = #tpu.pipeline_mode<synchronous>, transform_indices = @transform_3, window_bounds = array<i64: 1, 128>}, {pipeline_mode = #tpu.pipeline_mode<synchronous>, transform_indices = @transform_4, window_bounds = array<i64: 1, 128>}]} {
    %c0_i32 = arith.constant 0 : i32
    %0 = arith.cmpi eq, %arg0, %c0_i32 : i32
    %1 = arith.extui %0 : i1 to i32
    %c0_i32_0 = arith.constant 0 : i32
    %2 = arith.cmpi ne, %1, %c0_i32_0 : i32
    scf.if %2 {
      %cst_21 = arith.constant 0.000000e+00 : f32
      %31 = vector.broadcast %cst_21 : f32 to vector<1x128xf32>
      %c0_22 = arith.constant 0 : index
      %c0_23 = arith.constant 0 : index
      %32 = vector.load %arg6[%c0_22, %c0_23] : memref<1x128xf32, #tpu.memory_space<vmem>>, vector<1x128xf32>
      tpu.vector_store %arg6[%c0_22, %c0_23], %31 {strides = array<i32>} : memref<1x128xf32, #tpu.memory_space<vmem>>, vector<1x128xf32>,
      %cst_24 = arith.constant 0.000000e+00 : f32
      %33 = vector.broadcast %cst_24 : f32 to vector<1x128xf32>
      %c0_25 = arith.constant 0 : index
      %c0_26 = arith.constant 0 : index
      %34 = vector.load %arg7[%c0_25, %c0_26] : memref<1x128xf32, #tpu.memory_space<vmem>>, vector<1x128xf32>
      tpu.vector_store %arg7[%c0_25, %c0_26], %33 {strides = array<i32>} : memref<1x128xf32, #tpu.memory_space<vmem>>, vector<1x128xf32>,
    } else {
    }
    %c0 = arith.constant 0 : index
    %c0_1 = arith.constant 0 : index
    %3 = vector.load %arg1[%c0, %c0_1] : memref<16x128xf32, #tpu.memory_space<vmem>>, vector<16x128xf32>
    %c0_2 = arith.constant 0 : index
    %c0_3 = arith.constant 0 : index
    %4 = vector.load %arg2[%c0_2, %c0_3] : memref<128x128xf32, #tpu.memory_space<vmem>>, vector<128x128xf32>
    %cst = arith.constant dense<0.000000e+00> : vector<16x128xf32>
    %5 = tpu.matmul %3, %4, %cst {dimension_numbers = #tpu.dot_dimension_numbers<[1], [0], [0], [1], [0, 0, 1, 1], [], []>} : vector<16x128xf32>, vector<128x128xf32>, vector<16x128xf32> -> vector<16x128xf32>
    %c0_4 = arith.constant 0 : index
    %c0_5 = arith.constant 0 : index
    %6 = vector.load %arg3[%c0_4, %c0_5] : memref<1x128xf32, #tpu.memory_space<vmem>>, vector<1x128xf32>
    %7 = vector.broadcast %6 : vector<1x128xf32> to vector<16x128xf32>
    %8 = arith.addf %5, %7 : vector<16x128xf32>
    %cst_6 = arith.constant 5.000000e-01 : f32
    %9 = vector.broadcast %cst_6 : f32 to vector<16x128xf32>
    %10 = arith.mulf %9, %8 : vector<16x128xf32>
    %cst_7 = arith.constant 0.707106769 : f32
    %11 = vector.broadcast %cst_7 : f32 to vector<16x128xf32>
    %12 = arith.mulf %8, %11 : vector<16x128xf32>
    %13 = math.erf %12 : vector<16x128xf32>
    %cst_8 = arith.constant 1.000000e+00 : f32
    %14 = vector.broadcast %cst_8 : f32 to vector<16x128xf32>
    %15 = arith.addf %14, %13 : vector<16x128xf32>
    %16 = arith.mulf %10, %15 : vector<16x128xf32>
    %c0_9 = arith.constant 0 : index
    %c0_10 = arith.constant 0 : index
    %17 = vector.load %arg6[%c0_9, %c0_10] : memref<1x128xf32, #tpu.memory_space<vmem>>, vector<1x128xf32>
    %cst_11 = arith.constant dense<0.000000e+00> : vector<128xf32>
    %18 = vector.multi_reduction <add>, %16, %cst_11 [0] : vector<16x128xf32> to vector<128xf32>
    %19 = vector.shape_cast %18 : vector<128xf32> to vector<1x128xf32>
    %20 = arith.addf %17, %19 : vector<1x128xf32>
    %c0_12 = arith.constant 0 : index
    %c0_13 = arith.constant 0 : index
    %21 = vector.load %arg6[%c0_12, %c0_13] : memref<1x128xf32, #tpu.memory_space<vmem>>, vector<1x128xf32>
    tpu.vector_store %arg6[%c0_12, %c0_13], %20 {strides = array<i32>} : memref<1x128xf32, #tpu.memory_space<vmem>>, vector<1x128xf32>,
    %c0_14 = arith.constant 0 : index
    %c0_15 = arith.constant 0 : index
    %22 = vector.load %arg7[%c0_14, %c0_15] : memref<1x128xf32, #tpu.memory_space<vmem>>, vector<1x128xf32>
    %23 = arith.mulf %16, %16 : vector<16x128xf32>
    %cst_16 = arith.constant dense<0.000000e+00> : vector<128xf32>
    %24 = vector.multi_reduction <add>, %23, %cst_16 [0] : vector<16x128xf32> to vector<128xf32>
    %25 = vector.shape_cast %24 : vector<128xf32> to vector<1x128xf32>
    %26 = arith.addf %22, %25 : vector<1x128xf32>
    %c0_17 = arith.constant 0 : index
    %c0_18 = arith.constant 0 : index
    %27 = vector.load %arg7[%c0_17, %c0_18] : memref<1x128xf32, #tpu.memory_space<vmem>>, vector<1x128xf32>
    tpu.vector_store %arg7[%c0_17, %c0_18], %26 {strides = array<i32>} : memref<1x128xf32, #tpu.memory_space<vmem>>, vector<1x128xf32>,
    %c0_i32_19 = arith.constant 0 : i32
    %28 = arith.cmpi eq, %arg0, %c0_i32_19 : i32
    %29 = arith.extui %28 : i1 to i32
    %c0_i32_20 = arith.constant 0 : i32
    %30 = arith.cmpi ne, %29, %c0_i32_20 : i32
    scf.if %30 {
      %c0_21 = arith.constant 0 : index
      %c0_22 = arith.constant 0 : index
      %31 = vector.load %arg6[%c0_21, %c0_22] : memref<1x128xf32, #tpu.memory_space<vmem>>, vector<1x128xf32>
      %c0_23 = arith.constant 0 : index
      %c0_24 = arith.constant 0 : index
      %32 = vector.load %arg4[%c0_23, %c0_24] : memref<1x128xf32, #tpu.memory_space<vmem>>, vector<1x128xf32>
      tpu.vector_store %arg4[%c0_23, %c0_24], %31 {strides = array<i32>} : memref<1x128xf32, #tpu.memory_space<vmem>>, vector<1x128xf32>,
      %c0_25 = arith.constant 0 : index
      %c0_26 = arith.constant 0 : index
      %33 = vector.load %arg7[%c0_25, %c0_26] : memref<1x128xf32, #tpu.memory_space<vmem>>, vector<1x128xf32>
      %c0_27 = arith.constant 0 : index
      %c0_28 = arith.constant 0 : index
      %34 = vector.load %arg5[%c0_27, %c0_28] : memref<1x128xf32, #tpu.memory_space<vmem>>, vector<1x128xf32>
      tpu.vector_store %arg5[%c0_27, %c0_28], %33 {strides = array<i32>} : memref<1x128xf32, #tpu.memory_space<vmem>>, vector<1x128xf32>,
    } else {
    }
    return
  }
  func.func @transform_0(%arg0: i32) -> (i32, i32) {
    %c0_i32 = arith.constant 0 : i32
    %c0_i32_0 = arith.constant 0 : i32
    return %arg0, %c0_i32 : i32, i32
  }
  func.func @transform_1(%arg0: i32) -> (i32, i32) {
    %c0_i32 = arith.constant 0 : i32
    %c0_i32_0 = arith.constant 0 : i32
    %c0_i32_1 = arith.constant 0 : i32
    return %c0_i32, %c0_i32_0 : i32, i32
  }
  func.func @transform_2(%arg0: i32) -> (i32, i32) {
    %c0_i32 = arith.constant 0 : i32
    %c0_i32_0 = arith.constant 0 : i32
    %c0_i32_1 = arith.constant 0 : i32
    return %c0_i32, %c0_i32_0 : i32, i32
  }
  func.func @transform_3(%arg0: i32) -> (i32, i32) {
    %c0_i32 = arith.constant 0 : i32
    %c0_i32_0 = arith.constant 0 : i32
    %c0_i32_1 = arith.constant 0 : i32
    return %c0_i32, %c0_i32_0 : i32, i32
  }
  func.func @transform_4(%arg0: i32) -> (i32, i32) {
    %c0_i32 = arith.constant 0 : i32
    %c0_i32_0 = arith.constant 0 : i32
    %c0_i32_1 = arith.constant 0 : i32
    return %c0_i32, %c0_i32_0 : i32, i32
  }
}

</mosaic_0001>

<llo_original>
// kernel: tpu_custom_call.1
$region0: #{tpu_custom_call.1}
  #allocation0 [shape = 'u32[]', space=smem, size = 0x4, offset = 0x4, fixed_abs, tag = 'smem constant byte address 0x4 - core index']
  #allocation1 [shape = 'u32[72,128]{1,0:T(1,128)}', space=vmem, size = 0x9000, scoped, tag = 'internal scratch']
  #allocation2 [shape = 'f32[1,128]{1,0:T(1,128)}', space=vmem, size = 0x200, scoped, tag = 'scratch operand']
  #allocation3 [shape = 'f32[1,128]{1,0:T(1,128)}', space=vmem, size = 0x200, scoped, tag = 'scratch operand']
  %s0 = inlined_call_operand.hbm [shape: f32[16,128], index: 0, kind: input, shape index: {}]
  %s1 = inlined_call_operand.hbm [shape: f32[128,128], index: 1, kind: input, shape index: {}]
  %s2 = inlined_call_operand.vmem [shape: f32[1,128], index: 2, kind: input, shape index: {}]
  %s3 = inlined_call_operand.hbm [shape: f32[1,128], index: 3, kind: output, shape index: {0}]
  %s4 = inlined_call_operand.hbm [shape: f32[1,128], index: 4, kind: output, shape index: {1}]
  %5 = xla_tuple %s3, %s4
  %s6 = sld [smem:[#allocation0]]
  $region46: #{tpu_custom_call.1} parent=0
    _
  %s8 = ssub.s32 1, %s6
  %s9 = scalar_select 0, %s8, %s6
  $region1: #{tpu_custom_call.1} parent=0
    #allocation4 [shape = 'u8[8192]{0}', space=vmem, size = 0x2000, scoped, tag = 'input window, operand 0, single buffered']
    #allocation5 [shape = 's32[1]{0}', space=sflag, size = 0x4, scoped, tag = 'scoped memory for tpu_custom_call.1']
    #allocation6 [shape = 's32[1]{0}', space=sflag, size = 0x4, scoped, tag = 'scoped memory for tpu_custom_call.1']
    #allocation7 [shape = 'u8[65536]{0}', space=vmem, size = 0x10000, scoped, tag = 'input window, operand 1, single buffered']
    #allocation8 [shape = 's32[1]{0}', space=sflag, size = 0x4, scoped, tag = 'scoped memory for tpu_custom_call.1']
    #allocation9 [shape = 'u8[512]{0}', space=vmem, size = 0x400, scoped, tag = 'output window, operand 0, single buffered']
    #allocation10 [shape = 'u8[512]{0}', space=vmem, size = 0x400, scoped, tag = 'output window, operand 1, single buffered']
    #allocation11 [shape = 's32[1]{0}', space=sflag, size = 0x4, scoped, tag = 'scoped memory for tpu_custom_call.1']
    %10 = vsyncpa [#allocation5], 0
    %11 = vsyncpa [#allocation8], 0
    %12 = vsyncpa [#allocation6], 0
    %13 = vsyncpa [#allocation11], 0
    // Predicated region
    $region2: #{tpu_custom_call.1} parent=1 // pred_check
      _
    $region3: #{tpu_custom_call.1} parent=1 // pred_check_branch
      %15 = sbr.rel (0) target = $region5
    $region4: #{tpu_custom_call.1} parent=1 // pred_region
      %17 = vsyncadd [#allocation5], 0
      %s18 = sshll.u32 %s0, 4
      %s19 = int_to_ptr.hbm [resolvable:$true] %s18
      %s20 = sshll.u32 [#allocation4], 4
      %s21 = int_to_ptr.vmem [resolvable:$true] %s20
      %26 = dma.hbm_to_vmem [thread:$0]  %s19, 256, %s21, [#allocation5], 128, 128, 8
    $region5: #{tpu_custom_call.1} parent=1 // pred_fallthru
      _
    // Predicated region
    $region6: #{tpu_custom_call.1} parent=1 // pred_check
      _
    $region7: #{tpu_custom_call.1} parent=1 // pred_check_branch
      %28 = sbr.rel (0) target = $region9
    $region8: #{tpu_custom_call.1} parent=1 // pred_region
      %30 = vsyncadd [#allocation8], 0
      %s31 = sshll.u32 %s1, 4
      %s32 = int_to_ptr.hbm [resolvable:$true] %s31
      %s33 = sshll.u32 [#allocation7], 4
      %s34 = int_to_ptr.vmem [resolvable:$true] %s33
      %39 = dma.hbm_to_vmem [thread:$0]  %s32, 2048, %s34, [#allocation8], 128, 128, 8
    $region9: #{tpu_custom_call.1} parent=1 // pred_fallthru
      _
    // Predicated region
    $region10: #{tpu_custom_call.1} parent=1 // pred_check
      _
    $region11: #{tpu_custom_call.1} parent=1 // pred_check_branch
      %41 = sbr.rel (0) target = $region13
    $region12: #{tpu_custom_call.1} parent=1 // pred_region
      _
    $region13: #{tpu_custom_call.1} parent=1 // pred_fallthru
      _
    // Predicated region
    $region14: #{tpu_custom_call.1} parent=1 // pred_check
      _
    $region15: #{tpu_custom_call.1} parent=1 // pred_check_branch
      %43 = sbr.rel (0) target = $region17
    $region16: #{tpu_custom_call.1} parent=1 // pred_region
      %45 = dma.done [#allocation5], 256
    $region17: #{tpu_custom_call.1} parent=1 // pred_fallthru
      _
    // Predicated region
    $region18: #{tpu_custom_call.1} parent=1 // pred_check
      _
    $region19: #{tpu_custom_call.1} parent=1 // pred_check_branch
      %47 = sbr.rel (0) target = $region21
    $region20: #{tpu_custom_call.1} parent=1 // pred_region
      %49 = dma.done [#allocation8], 2048
    $region21: #{tpu_custom_call.1} parent=1 // pred_fallthru
      _
    %p50 = scmp.eq.s32.totalorder 0, 0
    // Predicated region
    $region22: #{tpu_custom_call.1} parent=1 // pred_check
      %p51 = pneg %p50
    $region23: #{tpu_custom_call.1} parent=1 // pred_check_branch
      %53 = sbr.rel (%p51) target = $region25
    $region24: #{tpu_custom_call.1} parent=1 // pred_region
      %54 = vst [vmem:[#allocation2] sm:$0x1] 0.0
      %55 = vst [vmem:[#allocation3] sm:$0x1] 0.0
    $region25: #{tpu_custom_call.1} parent=1 // pred_fallthru
      _
    %v56 = vld [vmem:[#allocation4] sm:$0xff]
    %v57 = vld [vmem:[#allocation4 + $0x8] sm:$0xff]
    %v58 = vld [vmem:[#allocation7] sm:$0xff]
    %v59 = vld [vmem:[#allocation7 + $0x8] sm:$0xff]
    %v60 = vld [vmem:[#allocation7 + $0x10] sm:$0xff]
    %v61 = vld [vmem:[#allocation7 + $0x18] sm:$0xff]
    %v62 = vld [vmem:[#allocation7 + $0x20] sm:$0xff]
    %v63 = vld [vmem:[#allocation7 + $0x28] sm:$0xff]
    %v64 = vld [vmem:[#allocation7 + $0x30] sm:$0xff]
    %v65 = vld [vmem:[#allocation7 + $0x38] sm:$0xff]
    %v66 = vld [vmem:[#allocation7 + $0x40] sm:$0xff]
    %v67 = vld [vmem:[#allocation7 + $0x48] sm:$0xff]
    %v68 = vld [vmem:[#allocation7 + $0x50] sm:$0xff]
    %v69 = vld [vmem:[#allocation7 + $0x58] sm:$0xff]
    %v70 = vld [vmem:[#allocation7 + $0x60] sm:$0xff]
    %v71 = vld [vmem:[#allocation7 + $0x68] sm:$0xff]
    %v72 = vld [vmem:[#allocation7 + $0x70] sm:$0xff]
    %v73 = vld [vmem:[#allocation7 + $0x78] sm:$0xff]
    %v74 = vld [vmem:[%s2] sm:$0x1]
    %v76 = vperm.slane %v74, 0
    %78 = vmatpush.msra.mxu0 %v73
    %79 = vmatpush.msra.mxu0 %v72
    %80 = vmatpush.msra.mxu0 %v71
    %81 = vmatpush.msra.mxu0 %v70
    %82 = vmatpush.msra.mxu0 %v69
    %83 = vmatpush.msra.mxu0 %v68
    %84 = vmatpush.msra.mxu0 %v67
    %85 = vmatpush.msra.mxu0 %v66
    %86 = vmatpush.msra.mxu0 %v65
    %87 = vmatpush.msra.mxu0 %v64
    %88 = vmatpush.msra.mxu0 %v63
    %89 = vmatpush.msra.mxu0 %v62
    %90 = vmatpush.msra.mxu0 %v61
    %91 = vmatpush.msra.mxu0 %v60
    %92 = vmatpush.msra.mxu0 %v59
    %93 = vmatpush.msra.mxu0 %v58
    %94 = vmatmul.f32.gmra.mxu0 %v56
    %v95 = vpop.f32.mrf.mxu0
    %v96 = vadd.f32 %v76, %v95
    %97 = vmatmul.f32.gmra.mxu0 %v57
    %v98 = vpop.f32.mrf.mxu0
    %v99 = vadd.f32 %v76, %v98
    %100 = vdwg.mxu0
    %v101 = vmul.f32 %v96, 0.5
    %v102 = vmul.f32 %v99, 0.5
    %v103 = vmul.f32 %v96, 0.70710677
    %v104 = vmul.f32 %v99, 0.70710677
    %v105 = vmul.f32 %v103, %v103
    %v106 = vmin.f32 16.0, %v105
    %v107 = vmul.f32 %v106, 2.1237322e-06
    %v108 = vadd.f32 %v107, 0.00028619796
    %v109 = vmul.f32 %v106, %v108
    %v110 = vadd.f32 %v109, 0.0036580483
    %v111 = vmul.f32 %v106, %v110
    %v112 = vadd.f32 %v111, 0.05243302
    %v113 = vmul.f32 %v106, %v112
    %v114 = vadd.f32 %v113, 0.18741608
    %v115 = vmul.f32 %v106, %v114
    %v116 = vadd.f32 %v115, 1.1283791
    %v117 = vmul.f32 %v103, %v116
    %v118 = vmul.f32 %v106, 3.8918573e-05
    %v119 = vadd.f32 %v118, 0.001143296
    %v120 = vmul.f32 %v106, %v119
    %v121 = vadd.f32 %v120, 0.014752088
    %v122 = vmul.f32 %v106, %v121
    %v123 = vadd.f32 %v122, 0.112945676
    %v124 = vmul.f32 %v106, %v123
    %v125 = vadd.f32 %v124, 0.4994258
    %v126 = vmul.f32 %v106, %v125
    %v127 = vadd.f32 %v126, 1.0
    %v128 = vrcp.pop %v127
    %v129 = vmul.f32 %v127, %v128
    %v130 = vsub.f32 1.0, %v129
    %v131 = vmul.f32 %v128, %v130
    %v132 = vadd.f32 %v128, %v131
    %vm133 = vweird.f32 %v127
    %vm134 = vweird.f32 %v128
    %vm135 = vmor %vm133, %vm134
    %v136 = vsel %vm135, %v128, %v132
    %v137 = vand.u32 2147483647, %v127
    %vm138 = vcmp.eq.f32.partialorder %v137, 8.507059e+37
    %v139 = vand.u32 %v127, 2147483648
    %v140 = vor.u32 1.1754944e-38, %v139
    %v141 = vsel %vm138, %v140, %v136
    %v142 = vmul.f32 %v117, %v141
    %v143 = vmin.f32 %v142, 1.0
    %v144 = vmax.f32 %v143, -1.0
    %v145 = vmul.f32 %v104, %v104
    %v146 = vmin.f32 16.0, %v145
    %v147 = vmul.f32 %v146, 2.1237322e-06
    %v148 = vadd.f32 %v147, 0.00028619796
    %v149 = vmul.f32 %v146, %v148
    %v150 = vadd.f32 %v149, 0.0036580483
    %v151 = vmul.f32 %v146, %v150
    %v152 = vadd.f32 %v151, 0.05243302
    %v153 = vmul.f32 %v146, %v152
    %v154 = vadd.f32 %v153, 0.18741608
    %v155 = vmul.f32 %v146, %v154
    %v156 = vadd.f32 %v155, 1.1283791
    %v157 = vmul.f32 %v104, %v156
    %v158 = vmul.f32 %v146, 3.8918573e-05
    %v159 = vadd.f32 %v158, 0.001143296
    %v160 = vmul.f32 %v146, %v159
    %v161 = vadd.f32 %v160, 0.014752088
    %v162 = vmul.f32 %v146, %v161
    %v163 = vadd.f32 %v162, 0.112945676
    %v164 = vmul.f32 %v146, %v163
    %v165 = vadd.f32 %v164, 0.4994258
    %v166 = vmul.f32 %v146, %v165
    %v167 = vadd.f32 %v166, 1.0
    %v168 = vrcp.pop %v167
    %v169 = vmul.f32 %v167, %v168
    %v170 = vsub.f32 1.0, %v169
    %v171 = vmul.f32 %v168, %v170
    %v172 = vadd.f32 %v168, %v171
    %vm173 = vweird.f32 %v167
    %vm174 = vweird.f32 %v168
    %vm175 = vmor %vm173, %vm174
    %v176 = vsel %vm175, %v168, %v172
    %v177 = vand.u32 2147483647, %v167
    %vm178 = vcmp.eq.f32.partialorder %v177, 8.507059e+37
    %v179 = vand.u32 %v167, 2147483648
    %v180 = vor.u32 1.1754944e-38, %v179
    %v181 = vsel %vm178, %v180, %v176
    %v182 = vmul.f32 %v157, %v181
    %v183 = vmin.f32 %v182, 1.0
    %v184 = vmax.f32 %v183, -1.0
    %v185 = vadd.f32 %v144, 1.0
    %v186 = vadd.f32 %v184, 1.0
    %v187 = vmul.f32 %v101, %v185
    %v188 = vmul.f32 %v102, %v186
    %v189 = vld [vmem:[#allocation2] sm:$0x1]
    %v190 = vadd.f32 %v187, %v188
    %v191 = vrot.slane %v190, 4
    %v192 = vadd.f32 %v190, %v191
    %v193 = vrot.slane %v192, 2
    %v194 = vadd.f32 %v192, %v193
    %v195 = vrot.slane %v194, 1
    %v196 = vadd.f32 %v194, %v195
    %v197 = vadd.f32 %v189, %v196
    %198 = vst [vmem:[#allocation2] sm:$0x1] %v197
    %v199 = vld [vmem:[#allocation3] sm:$0x1]
    %v200 = vmul.f32 %v187, %v187
    %v201 = vmul.f32 %v188, %v188
    %v202 = vadd.f32 %v200, %v201
    %v203 = vrot.slane %v202, 4
    %v204 = vadd.f32 %v202, %v203
    %v205 = vrot.slane %v204, 2
    %v206 = vadd.f32 %v204, %v205
    %v207 = vrot.slane %v206, 1
    %v208 = vadd.f32 %v206, %v207
    %v209 = vadd.f32 %v199, %v208
    %210 = vst [vmem:[#allocation3] sm:$0x1] %v209
    // Predicated region
    $region26: #{tpu_custom_call.1} parent=1 // pred_check
      %p211 = pneg %p50
    $region27: #{tpu_custom_call.1} parent=1 // pred_check_branch
      %213 = sbr.rel (%p211) target = $region29
    $region28: #{tpu_custom_call.1} parent=1 // pred_region
      %v214 = vld [vmem:[#allocation2] sm:$0x1]
      %215 = vst [vmem:[#allocation9] sm:$0x1] %v214
      %v216 = vld [vmem:[#allocation3] sm:$0x1]
      %217 = vst [vmem:[#allocation10] sm:$0x1] %v216
    $region29: #{tpu_custom_call.1} parent=1 // pred_fallthru
      _
    // Predicated region
    $region30: #{tpu_custom_call.1} parent=1 // pred_check
      _
    $region31: #{tpu_custom_call.1} parent=1 // pred_check_branch
      %219 = sbr.rel (0) target = $region33
    $region32: #{tpu_custom_call.1} parent=1 // pred_region
      %221 = vsyncadd [#allocation6], 0
      %s223 = sshll.u32 [#allocation9], 4
      %s224 = int_to_ptr.vmem [resolvable:$true] %s223
      %s225 = sshll.u32 %s3, 4
      %s226 = int_to_ptr.hbm [resolvable:$true] %s225
      %228 = dma.vmem_to_hbm [thread:$0]  %s224, 16, %s226, [#allocation6]
    $region33: #{tpu_custom_call.1} parent=1 // pred_fallthru
      _
    // Predicated region
    $region34: #{tpu_custom_call.1} parent=1 // pred_check
      _
    $region35: #{tpu_custom_call.1} parent=1 // pred_check_branch
      %230 = sbr.rel (0) target = $region37
    $region36: #{tpu_custom_call.1} parent=1 // pred_region
      %232 = vsyncadd [#allocation11], 0
      %s234 = sshll.u32 [#allocation10], 4
      %s235 = int_to_ptr.vmem [resolvable:$true] %s234
      %s236 = sshll.u32 %s4, 4
      %s237 = int_to_ptr.hbm [resolvable:$true] %s236
      %239 = dma.vmem_to_hbm [thread:$0]  %s235, 16, %s237, [#allocation11]
    $region37: #{tpu_custom_call.1} parent=1 // pred_fallthru
      _
    // Predicated region
    $region38: #{tpu_custom_call.1} parent=1 // pred_check
      _
    $region39: #{tpu_custom_call.1} parent=1 // pred_check_branch
      %241 = sbr.rel (0) target = $region41
    $region40: #{tpu_custom_call.1} parent=1 // pred_region
      %243 = dma.done [#allocation6], 16
    $region41: #{tpu_custom_call.1} parent=1 // pred_fallthru
      _
    // Predicated region
    $region42: #{tpu_custom_call.1} parent=1 // pred_check
      _
    $region43: #{tpu_custom_call.1} parent=1 // pred_check_branch
      %245 = sbr.rel (0) target = $region45
    $region44: #{tpu_custom_call.1} parent=1 // pred_region
      %247 = dma.done [#allocation11], 16
    $region45: #{tpu_custom_call.1} parent=1 // pred_fallthru
      _
    %248 = vsyncpa [#allocation5], 1
    %249 = vsyncpa [#allocation8], 1
    %250 = vsyncpa [#allocation6], 1
    %251 = vsyncpa [#allocation11], 1

</llo_original>
